<compile_context>
chip_gen: v5e
topology: v5e:2x2
jax: 0.10.0
libtpu: 0.0.40
codegen_flags: <defaults>
</compile_context>

<pallas_src>
import jax
import jax.numpy as jnp
from jax.experimental import pallas as pl
from jax.experimental.pallas import tpu as pltpu


_LANES = 128
_TB_MAX = 8192     # max rows per batch tile; see VMEM accounting in the header


def _round_up(x, m):
    return (x + m - 1) // m * m


def _choose_tile_rows(batch, tb_max=_TB_MAX):
    """Pick the batch-tile (row) size.

    * Always a multiple of 128 (the lane dim of the transposed output).
    * The grid is pl.cdiv(batch, TB) so TB need not divide the batch -- Pallas
      masks the ragged last block; no collapse to tiny tiles for awkward B.
    * Guarantees >= 2 grid steps whenever the (128-rounded) batch allows it so
      the "parallel" batch axis actually shards across v7x's two TensorCores.
    """
    bp = _round_up(max(batch, 1), _LANES)
    if bp >= 2 * _LANES:
        tb = _round_up(bp // 2, _LANES)   # at most half the batch per step
    else:
        tb = bp
    return min(tb, tb_max)


def _deterministic_kernel(x_ref, wt_ref, b_ref, mu_t_ref):
    # x_ref:    (TB, K)  VMEM  -- streamed batch tile (features on lanes)
    # wt_ref:   (N, K)   VMEM  -- transposed weight (f32), resident across steps
    # b_ref:    (N, 1)   VMEM  -- bias column (f32), resident across steps
    # mu_t_ref: (N, TB)  VMEM  -- transposed output (batch on lanes -> dense vst)
    x = x_ref[...]
    if x.dtype != jnp.float32:
        x = x.astype(jnp.float32)         # cheap VPU cast, hidden behind DMA
    z = jax.lax.dot_general(
        wt_ref[...], x,
        dimension_numbers=(((1,), (1,)), ((), ())),   # contract K with K -> (N, TB)
        preferred_element_type=jnp.float32,
    )
    z = z + b_ref[...]                    # bias broadcasts over the lane (batch) dim
    # clip(tanh(z), -1, 1) == tanh(z) in f32; no second output buffer / HBM write.
    mu_t_ref[...] = jnp.tanh(z).astype(mu_t_ref.dtype)


def deterministic_forward(x, weight, bias, *, deterministic=True,
                          out_dtype=None, return_transposed=False,
                          tile_rows=None):
    """Pallas-TPU forward of the Deterministic head.

    Args:
      x:      (B, num_inputs). dtype is taken as-is (f32 or bf16); no wrapper cast.
      weight: (num_inputs, num_outputs) so that x @ weight + bias == torch Linear.
      bias:   (num_outputs,).
      deterministic: only the True path is kernelized (see TODO below).
      out_dtype: dtype of mu (default f32). bf16 halves the output HBM write.
      return_transposed: if True, return mu with shape (num_outputs, B) and skip
        the wrapper transpose (preferred when the consumer tolerates that layout).
      tile_rows: optional batch-tile override (testing/tuning); rounded up to 128.

    Returns:
      (mu, clipped_action, None, None, clipped_action), matching the PyTorch API.
      clipped_action is the same array as mu (tanh already lies in [-1, 1]).
    """
    B, K = x.shape
    N = weight.shape[1]

    if tile_rows is None:
        TB = _choose_tile_rows(B)
    else:
        TB = max(_LANES, _round_up(tile_rows, _LANES))
    grid = (pl.cdiv(B, TB),)

    out_dtype = jnp.float32 if out_dtype is None else out_dtype
    w_t = weight.astype(jnp.float32).T            # (N, K): tiny, VMEM-resident, kept f32
    b_col = bias.astype(jnp.float32).reshape(N, 1)

    mu_t = pl.pallas_call(
        _deterministic_kernel,
        out_shape=jax.ShapeDtypeStruct((N, B), out_dtype),
        grid=grid,
        in_specs=[
            pl.BlockSpec((TB, K), lambda i: (i, 0)),   # streamed batch tile (ragged last block OK)
            pl.BlockSpec((N, K), lambda i: (0, 0)),    # weight: constant -> resident
            pl.BlockSpec((N, 1), lambda i: (0, 0)),    # bias:   constant -> resident
        ],
        out_specs=pl.BlockSpec((N, TB), lambda i: (0, i)),
        compiler_params=pltpu.CompilerParams(
            dimension_semantics=("parallel",),         # megacore-shardable on v7x
        ),
    )(x, w_t, b_col)

    mu = mu_t if return_transposed else mu_t.T       # (B, N) unless caller opts out

    # TODO(synk): the stochastic (deterministic=False) noise.sample() branch and the
    # torch.Distribution object have no Pallas equivalent; only the default
    # deterministic path is kernelized (clipped action returned in the dist slot).
    return mu, mu, None, None, mu


def deterministic_evaluate_pred(x, weight, bias, **kwargs):
    """Mirror of Deterministic.evaluate_pred: returns (None, None, clamp(tanh(Wx+b)))."""
    _, clipped, _, _, _ = deterministic_forward(x, weight, bias, **kwargs)
    return None, None, clipped


def _init_params(key, num_inputs, num_outputs):
    """Init mirroring init_(nn.Linear): orthogonal torch-weight rows, zero bias."""
    k = jax.random.PRNGKey(0) if key is None else key
    a = jax.random.normal(k, (num_inputs, num_outputs), dtype=jnp.float32)
    q, r = jnp.linalg.qr(a)
    q = q * jnp.sign(jnp.diag(r))[None, :]
    weight = q[:, :num_outputs]          # (num_inputs, num_outputs)
    bias = jnp.zeros((num_outputs,), dtype=jnp.float32)
    return weight, bias


if __name__ == "__main__":
    num_inputs = 32
    num_outputs = 8
    batch = 4

    key = jax.random.PRNGKey(0)
    k_x, k_w, k_x2, k_b = jax.random.split(key, 4)

    x = jax.random.normal(k_x, (batch, num_inputs), dtype=jnp.float32)
    weight, _zero_bias = _init_params(k_w, num_inputs, num_outputs)
    # Non-zero bias for the correctness check (module init uses zeros).
    bias = 0.1 * jax.random.normal(k_b, (num_outputs,), dtype=jnp.float32)

    mu, clipped, logp, entropy_dist, dist = deterministic_forward(x, weight, bias)
    jax.block_until_ready(mu)

    mu_ref = jnp.tanh(x @ weight + bias[None, :])
    clip_ref = jnp.clip(mu_ref, -1.0, 1.0)
    assert mu.shape == (batch, num_outputs)
    assert jnp.allclose(mu, mu_ref, atol=1e-5), "mu mismatch"
    assert jnp.allclose(clipped, clip_ref, atol=1e-5), "clipped_action mismatch"
    assert logp is None and entropy_dist is None

    # Ragged multi-tile grid path: B=300 with TB=128 -> 3 grid steps, last block
    # has only 44 valid rows (exercises cdiv grid + masked ragged block, no jnp.pad).
    batch2 = 300
    x2 = jax.random.normal(k_x2, (batch2, num_inputs), dtype=jnp.float32)
    mu2, clipped2, *_ = deterministic_forward(x2, weight, bias, tile_rows=128)
    jax.block_until_ready(mu2)
    mu2_ref = jnp.tanh(x2 @ weight + bias[None, :])
    assert mu2.shape == (batch2, num_outputs)
    assert jnp.allclose(mu2, mu2_ref, atol=1e-5), "tiled mu mismatch"
    assert jnp.allclose(clipped2, jnp.clip(mu2_ref, -1.0, 1.0), atol=1e-5)

    # Default tiler path (>= 2 grid steps for megacore) on an exact 128-multiple batch.
    batch3 = 512
    x3 = jax.random.normal(k_x2, (batch3, num_inputs), dtype=jnp.float32)
    mu3, *_ = deterministic_forward(x3, weight, bias)
    jax.block_until_ready(mu3)
    mu3_ref = jnp.tanh(x3 @ weight + bias[None, :])
    assert jnp.allclose(mu3, mu3_ref, atol=1e-5), "default-tile mu mismatch"

    # bf16 input arriving from upstream (no wrapper cast; weight stays f32),
    # transposed + bf16 output fast path.
    mu4_t, *_ = deterministic_forward(x3.astype(jnp.bfloat16), weight, bias,
                                      out_dtype=jnp.bfloat16,
                                      return_transposed=True)
    jax.block_until_ready(mu4_t)
    assert mu4_t.shape == (num_outputs, batch3)
    assert jnp.allclose(mu4_t.T.astype(jnp.float32), mu3_ref, atol=5e-2), "bf16 mu mismatch"

    # evaluate_pred mirror.
    _, _, pred = deterministic_evaluate_pred(x, weight, bias)
    assert jnp.allclose(pred, clip_ref, atol=1e-5), "evaluate_pred mismatch"

    print("KERNEL_OK")
</pallas_src>

<mosaic_0001>
module attributes {stable_mosaic.version = 11 : i64} {
  func.func @_deterministic_kernel(%arg0: i32, %arg1: memref<128x32xf32, #tpu.memory_space<vmem>>, %arg2: memref<8x32xf32, #tpu.memory_space<vmem>>, %arg3: memref<8x1xf32, #tpu.memory_space<vmem>>, %arg4: memref<8x128xf32, #tpu.memory_space<vmem>>) attributes {dimension_semantics = [#tpu.dimension_semantics<parallel>], iteration_bounds = array<i64: 1>, scalar_prefetch = 0 : i64, scratch_operands = 0 : i64, tpu.core_type = #tpu.core_type<tc>, window_params = [{transform_indices = @transform_0, window_bounds = array<i64: 128, 32>}, {pipeline_mode = #tpu.pipeline_mode<synchronous>, transform_indices = @transform_1, window_bounds = array<i64: 8, 32>}, {pipeline_mode = #tpu.pipeline_mode<synchronous>, transform_indices = @transform_2, window_bounds = array<i64: 8, 1>}, {transform_indices = @transform_3, window_bounds = array<i64: 8, 128>}]} {
    %c0 = arith.constant 0 : index
    %c0_0 = arith.constant 0 : index
    %0 = vector.load %arg1[%c0, %c0_0] : memref<128x32xf32, #tpu.memory_space<vmem>>, vector<128x32xf32>
    %c0_1 = arith.constant 0 : index
    %c0_2 = arith.constant 0 : index
    %1 = vector.load %arg2[%c0_1, %c0_2] : memref<8x32xf32, #tpu.memory_space<vmem>>, vector<8x32xf32>
    %cst = arith.constant dense<0.000000e+00> : vector<8x128xf32>
    %2 = tpu.matmul %1, %0, %cst {dimension_numbers = #tpu.dot_dimension_numbers<[1], [1], [0], [0], [0, 0, 1, 0], [], []>} : vector<8x32xf32>, vector<128x32xf32>, vector<8x128xf32> -> vector<8x128xf32>
    %c0_3 = arith.constant 0 : index
    %c0_4 = arith.constant 0 : index
    %3 = vector.load %arg3[%c0_3, %c0_4] : memref<8x1xf32, #tpu.memory_space<vmem>>, vector<8x1xf32>
    %4 = vector.broadcast %3 : vector<8x1xf32> to vector<8x128xf32>
    %5 = arith.addf %2, %4 : vector<8x128xf32>
    %6 = math.tanh %5 : vector<8x128xf32>
    %c0_5 = arith.constant 0 : index
    %c0_6 = arith.constant 0 : index
    %7 = vector.load %arg4[%c0_5, %c0_6] : memref<8x128xf32, #tpu.memory_space<vmem>>, vector<8x128xf32>
    tpu.vector_store %arg4[%c0_5, %c0_6], %6 {strides = array<i32>} : memref<8x128xf32, #tpu.memory_space<vmem>>, vector<8x128xf32>,
    return
  }
  func.func @transform_0(%arg0: i32) -> (i32, i32) {
    %c0_i32 = arith.constant 0 : i32
    %c0_i32_0 = arith.constant 0 : i32
    return %arg0, %c0_i32 : i32, i32
  }
  func.func @transform_1(%arg0: i32) -> (i32, i32) {
    %c0_i32 = arith.constant 0 : i32
    %c0_i32_0 = arith.constant 0 : i32
    %c0_i32_1 = arith.constant 0 : i32
    return %c0_i32, %c0_i32_0 : i32, i32
  }
  func.func @transform_2(%arg0: i32) -> (i32, i32) {
    %c0_i32 = arith.constant 0 : i32
    %c0_i32_0 = arith.constant 0 : i32
    %c0_i32_1 = arith.constant 0 : i32
    return %c0_i32, %c0_i32_0 : i32, i32
  }
  func.func @transform_3(%arg0: i32) -> (i32, i32) {
    %c0_i32 = arith.constant 0 : i32
    %c0_i32_0 = arith.constant 0 : i32
    return %c0_i32, %arg0 : i32, i32
  }
}

</mosaic_0001>

<llo_original>
// kernel: tpu_custom_call.1
$region0: #{tpu_custom_call.1}
  #allocation0 [shape = 'u32[]', space=smem, size = 0x4, offset = 0x4, fixed_abs, tag = 'smem constant byte address 0x4 - core index']
  #allocation1 [shape = 'u32[72,128]{1,0:T(1,128)}', space=vmem, size = 0x9000, scoped, tag = 'internal scratch']
  %s0 = inlined_call_operand.hbm [shape: f32[4,32], index: 0, kind: input, shape index: {}]
  %s1 = inlined_call_operand.vmem [shape: f32[8,32], index: 1, kind: input, shape index: {}]
  %s2 = inlined_call_operand.vmem [shape: f32[8,1], index: 2, kind: input, shape index: {}]
  %s3 = inlined_call_operand.vmem [shape: f32[8,4], index: 3, kind: output, shape index: {}]
  %s4 = sld [smem:[#allocation0]]
  $region26: #{tpu_custom_call.1} parent=0
    _
  %s6 = ssub.s32 1, %s4
  %s7 = scalar_select 0, %s6, %s4
  $region1: #{tpu_custom_call.1} parent=0
    #allocation2 [shape = 'u8[65536]{0}', space=vmem, size = 0x10000, scoped, tag = 'input window, operand 0, single buffered']
    #allocation3 [shape = 's32[1]{0}', space=sflag, size = 0x4, scoped, tag = 'scoped memory for tpu_custom_call.1']
    %8 = vsyncpa [#allocation3], 0
    // Predicated region
    $region2: #{tpu_custom_call.1} parent=1 // pred_check
      _
    $region3: #{tpu_custom_call.1} parent=1 // pred_check_branch
      %10 = sbr.rel (0) target = $region5
    $region4: #{tpu_custom_call.1} parent=1 // pred_region
      %12 = vsyncadd [#allocation3], 1984
      %s13 = sshll.u32 %s0, 4
      %s14 = int_to_ptr.hbm [resolvable:$true] %s13
      %s15 = sshll.u32 [#allocation2], 4
      %s16 = int_to_ptr.vmem [resolvable:$true] %s15
      %21 = dma.hbm_to_vmem [thread:$0]  %s14, 64, %s16, [#allocation3], 64, 64, 4
    $region5: #{tpu_custom_call.1} parent=1 // pred_fallthru
      _
    // Predicated region
    $region6: #{tpu_custom_call.1} parent=1 // pred_check
      _
    $region7: #{tpu_custom_call.1} parent=1 // pred_check_branch
      %23 = sbr.rel (0) target = $region9
    $region8: #{tpu_custom_call.1} parent=1 // pred_region
      _
    $region9: #{tpu_custom_call.1} parent=1 // pred_fallthru
      _
    // Predicated region
    $region10: #{tpu_custom_call.1} parent=1 // pred_check
      _
    $region11: #{tpu_custom_call.1} parent=1 // pred_check_branch
      %25 = sbr.rel (0) target = $region13
    $region12: #{tpu_custom_call.1} parent=1 // pred_region
      _
    $region13: #{tpu_custom_call.1} parent=1 // pred_fallthru
      _
    // Predicated region
    $region14: #{tpu_custom_call.1} parent=1 // pred_check
      _
    $region15: #{tpu_custom_call.1} parent=1 // pred_check_branch
      %27 = sbr.rel (0) target = $region17
    $region16: #{tpu_custom_call.1} parent=1 // pred_region
      %29 = dma.done [#allocation3], 2048
    $region17: #{tpu_custom_call.1} parent=1 // pred_fallthru
      _
    %v30 = vld [vmem:[#allocation2] sm:$0xff]
    %v31 = vld [vmem:[#allocation2 + $0x8] sm:$0xff]
    %v32 = vld [vmem:[#allocation2 + $0x10] sm:$0xff]
    %v33 = vld [vmem:[#allocation2 + $0x18] sm:$0xff]
    %v34 = vld [vmem:[#allocation2 + $0x20] sm:$0xff]
    %v35 = vld [vmem:[#allocation2 + $0x28] sm:$0xff]
    %v36 = vld [vmem:[#allocation2 + $0x30] sm:$0xff]
    %v37 = vld [vmem:[#allocation2 + $0x38] sm:$0xff]
    %v38 = vld [vmem:[#allocation2 + $0x40] sm:$0xff]
    %v39 = vld [vmem:[#allocation2 + $0x48] sm:$0xff]
    %v40 = vld [vmem:[#allocation2 + $0x50] sm:$0xff]
    %v41 = vld [vmem:[#allocation2 + $0x58] sm:$0xff]
    %v42 = vld [vmem:[#allocation2 + $0x60] sm:$0xff]
    %v43 = vld [vmem:[#allocation2 + $0x68] sm:$0xff]
    %v44 = vld [vmem:[#allocation2 + $0x70] sm:$0xff]
    %v45 = vld [vmem:[#allocation2 + $0x78] sm:$0xff]
    %v46 = vld [vmem:[%s1] sm:$0xff]
    %v47 = vld [vmem:[%s2] sm:$0xff]
    %49 = vset.pattern.permute.xlu0 0
    %50 = vperm.xlu0 %49, %v47
    %v51 = vpop.permute.xlu0 %50
    %vm53 = vcmask 261120
    %v55 = vsel %vm53, %v46, 0
    %v58 = vsel %vm53, %v30, 0
    %v61 = vsel %vm53, %v31, 0
    %v64 = vsel %vm53, %v32, 0
    %v67 = vsel %vm53, %v33, 0
    %v70 = vsel %vm53, %v34, 0
    %v73 = vsel %vm53, %v35, 0
    %v76 = vsel %vm53, %v36, 0
    %v79 = vsel %vm53, %v37, 0
    %v82 = vsel %vm53, %v38, 0
    %v85 = vsel %vm53, %v39, 0
    %v88 = vsel %vm53, %v40, 0
    %v91 = vsel %vm53, %v41, 0
    %v94 = vsel %vm53, %v42, 0
    %v97 = vsel %vm53, %v43, 0
    %v100 = vsel %vm53, %v44, 0
    %v103 = vsel %vm53, %v45, 0
    %105 = vmatpush.xpose.msra.mxu0 %v103
    %106 = vmatpush.xpose.msra.mxu0 %v100
    %107 = vmatpush.xpose.msra.mxu0 %v97
    %108 = vmatpush.xpose.msra.mxu0 %v94
    %109 = vmatpush.xpose.msra.mxu0 %v91
    %110 = vmatpush.xpose.msra.mxu0 %v88
    %111 = vmatpush.xpose.msra.mxu0 %v85
    %112 = vmatpush.xpose.msra.mxu0 %v82
    %113 = vmatpush.xpose.msra.mxu0 %v79
    %114 = vmatpush.xpose.msra.mxu0 %v76
    %115 = vmatpush.xpose.msra.mxu0 %v73
    %116 = vmatpush.xpose.msra.mxu0 %v70
    %117 = vmatpush.xpose.msra.mxu0 %v67
    %118 = vmatpush.xpose.msra.mxu0 %v64
    %119 = vmatpush.xpose.msra.mxu0 %v61
    %120 = vmatpush.xpose.msra.mxu0 %v58
    %121 = vmatmul.f32.gmra.mxu0 %v55
    %v122 = vpop.f32.mrf.mxu0
    %v123 = vadd.f32 %v51, %v122
    %124 = vdwg.mxu0
    %v125 = vtanh.pop %v123
    %126 = vst [vmem:[%s3] sm:$0xff] %v125
    // Predicated region
    $region18: #{tpu_custom_call.1} parent=1 // pred_check
      _
    $region19: #{tpu_custom_call.1} parent=1 // pred_check_branch
      %128 = sbr.rel (0) target = $region21
    $region20: #{tpu_custom_call.1} parent=1 // pred_region
      _
    $region21: #{tpu_custom_call.1} parent=1 // pred_fallthru
      _
    // Predicated region
    $region22: #{tpu_custom_call.1} parent=1 // pred_check
      _
    $region23: #{tpu_custom_call.1} parent=1 // pred_check_branch
      %130 = sbr.rel (0) target = $region25
    $region24: #{tpu_custom_call.1} parent=1 // pred_region
      _
    $region25: #{tpu_custom_call.1} parent=1 // pred_fallthru
      _
    %131 = vsyncpa [#allocation3], 1

</llo_original>
